<compile_context>
chip_gen: v7x
topology: tpu7x:2x2x1
jax: 0.10.0
libtpu: 0.0.40
codegen_flags: <defaults>
</compile_context>

<pallas_src>
import math

import jax
import jax.numpy as jnp
from jax import lax
from jax.experimental import pallas as pl
from jax.experimental.pallas import tpu as pltpu


# ----------------------------------------------------------------------------
# Pallas kernel (built with static dims closed over).
# ----------------------------------------------------------------------------
def _build_kernel(B, N, C, H0, H1):
    def kernel(x_ref, wqkv_ref, w1_ref, wr1_ref, vec_ref, o_ref):
        x = x_ref[...]                                   # (B*N, C)
        vec = vec_ref[...]                               # (1, P) packed params

        # Static lane slices of the packed parameter row (all within one vreg).
        off = 0
        bqkv = vec[:, off:off + 3 * C]; off += 3 * C     # (1, 3C)
        b1 = vec[:, off:off + H0]; off += H0             # (1, H0)
        br1 = vec[:, off:off + H1]; off += H1            # (1, H1)
        wr2 = vec[:, off:off + H1]; off += H1            # (1, H1) final weights
        br2 = vec[:, off:off + 1]                        # (1, 1)  final bias

        # Fused q/k/v projection: 1x1 convs == per-position linear maps (MXU).
        # (1/sqrt(d_k) is already folded into the q columns of wqkv/bqkv.)
        qkv = jnp.dot(x, wqkv_ref[...],
                      preferred_element_type=jnp.float32) + bqkv   # (B*N, 3C)
        q = qkv[:, 0:C]
        k = qkv[:, C:2 * C]
        v = qkv[:, 2 * C:3 * C]

        # Scaled dot-product attention per batch element (B is tiny: unroll).
        vals_rows = []
        for b in range(B):
            rows = slice(b * N, (b + 1) * N)             # sublane-aligned (N=8)
            qb, kb, vb = q[rows], k[rows], v[rows]
            # Contract the last axes of both operands: no explicit k transpose.
            logits = lax.dot_general(
                qb, kb, (((1,), (1,)), ((), ())),
                preferred_element_type=jnp.float32)                # (N, N)
            m = jnp.max(logits, axis=-1, keepdims=True)
            e = jnp.exp(logits - m)
            denom = jnp.sum(e, axis=-1, keepdims=True)
            acc = jnp.dot(e, vb, preferred_element_type=jnp.float32)
            # Normalise after the value matmul (one broadcast-mul, EUP recip).
            vals_rows.append(acc * pl.reciprocal(denom, approx=True))
        vals = jnp.concatenate(vals_rows, axis=0)                  # (B*N, C)

        # Residual; BN1 (eval) is folded into w1/b1.
        x1 = x + vals

        # conv1 -> ReLU (dropout = identity; BN2 folded into the next weight).
        h = jnp.dot(x1, w1_ref[...],
                    preferred_element_type=jnp.float32) + b1       # (B*N, H0)
        h = jnp.maximum(h, 0.0)

        # reg conv #1 (BN2 folded on the input side, BN3 on the output side)
        # -> ReLU.
        g = jnp.dot(h, wr1_ref[...],
                    preferred_element_type=jnp.float32) + br1      # (B*N, H1)
        g = jnp.maximum(g, 0.0)

        # Final H1 -> 1 projection emitted lane-dense: contract the last axes
        # so the per-position result lands directly on the lane axis (1, B*N).
        logit = lax.dot_general(
            wr2, g, (((1,), (1,)), ((), ())),
            preferred_element_type=jnp.float32) + br2              # (1, B*N)
        o_ref[...] = jax.nn.sigmoid(logit)

    return kernel


# ----------------------------------------------------------------------------
# One-time parameter transform: fold BN + 1/sqrt(d_k) into weights, pack.
# ----------------------------------------------------------------------------
def fold_and_pack_params(p, input_dim, hidden_dim):
    C = input_dim
    H0, H1 = hidden_dim
    inv_sqrt_dk = 1.0 / math.sqrt(C)

    # 1/sqrt(d_k) folded into the q projection; q/k/v fused into one matmul.
    wq = p["wq"] * inv_sqrt_dk
    bq = p["bq"] * inv_sqrt_dk
    wqkv = jnp.concatenate([wq, p["wk"], p["wv"]], axis=1)          # (C, 3C)
    bqkv = jnp.concatenate([bq, p["bk"], p["bv"]], axis=1)          # (1, 3C)

    # BN1 (applied to the residual before conv1) folded into conv1.
    s1, t1 = p["bn1_s"], p["bn1_b"]
    w1f = p["w1"] * s1.reshape(C, 1)                                # (C, H0)
    b1f = t1 @ p["w1"] + p["b1"]                                    # (1, H0)

    # BN2 (post-ReLU, end of attention layer) folded into reg-conv#1's input
    # side; BN3 (after reg-conv#1, before ReLU) folded into its output side.
    s2, t2 = p["bn2_s"], p["bn2_b"]
    s3, t3 = p["bn3_s"], p["bn3_b"]
    wr1f = (p["wr1"] * s2.reshape(H0, 1)) * s3                      # (H0, H1)
    br1f = (t2 @ p["wr1"] + p["br1"]) * s3 + t3                     # (1, H1)

    wr2_row = p["wr2"].reshape(1, H1)                               # (1, H1)
    br2 = p["br2"].reshape(1, 1)                                    # (1, 1)

    # Pack all row vectors into one lane-contiguous array (fewer DMA'd inputs).
    vec = jnp.concatenate([bqkv, b1f, br1f, wr2_row, br2], axis=1)  # (1, 3C+H0+2H1+1)
    return {"wqkv": wqkv, "w1": w1f, "wr1": wr1f, "vec": vec}


# ----------------------------------------------------------------------------
# Wrapper: single pallas_call, no grid (whole problem is a few vregs).
# ----------------------------------------------------------------------------
def transformer_conv_forward(x, packed):
    """x: (B, N, input_dim) float32; packed: output of fold_and_pack_params.
    Returns (B, N) float32."""
    B, N, C = x.shape
    H0 = packed["w1"].shape[1]
    H1 = packed["wr1"].shape[1]
    x2d = x.reshape(B * N, C)

    kernel = _build_kernel(B, N, C, H0, H1)
    out_row = pl.pallas_call(
        kernel,
        out_shape=jax.ShapeDtypeStruct((1, B * N), jnp.float32),
        compiler_params=pltpu.CompilerParams(
            vmem_limit_bytes=8 * 1024 * 1024),
    )(x2d, packed["wqkv"], packed["w1"], packed["wr1"], packed["vec"])
    return out_row.reshape(B, N)


# ----------------------------------------------------------------------------
# Deterministic parameter construction (synthetic init; eval-mode BN expressed
# as per-channel scale/bias, the raw parameterization).
# ----------------------------------------------------------------------------
def make_params(input_dim, hidden_dim, key):
    H0, H1 = hidden_dim
    eps = 1e-5
    keys = jax.random.split(key, 24)
    ki = iter(keys)

    def lin(k, cin, cout, scale=0.2):
        kw, kb = jax.random.split(k)
        w = jax.random.normal(kw, (cin, cout), jnp.float32) * scale
        b = jax.random.normal(kb, (1, cout), jnp.float32) * 0.05
        return w, b

    def bn(k, c):
        k1, k2, k3, k4 = jax.random.split(k, 4)
        gamma = 1.0 + 0.1 * jax.random.normal(k1, (c,), jnp.float32)
        beta = 0.05 * jax.random.normal(k2, (c,), jnp.float32)
        rmean = 0.1 * jax.random.normal(k3, (c,), jnp.float32)
        rvar = jax.random.uniform(k4, (c,), jnp.float32, 0.5, 1.5)
        scale = gamma / jnp.sqrt(rvar + eps)
        bias = beta - rmean * scale
        return scale.reshape(1, c), bias.reshape(1, c)

    p = {}
    p["wq"], p["bq"] = lin(next(ki), input_dim, input_dim)
    p["wk"], p["bk"] = lin(next(ki), input_dim, input_dim)
    p["wv"], p["bv"] = lin(next(ki), input_dim, input_dim)
    p["bn1_s"], p["bn1_b"] = bn(next(ki), input_dim)
    p["w1"], p["b1"] = lin(next(ki), input_dim, H0)
    p["bn2_s"], p["bn2_b"] = bn(next(ki), H0)
    p["wr1"], p["br1"] = lin(next(ki), H0, H1)
    p["bn3_s"], p["bn3_b"] = bn(next(ki), H1)
    p["wr2"], p["br2"] = lin(next(ki), H1, 1)
    return p


# ----------------------------------------------------------------------------
# Pure-JAX reference of the same (eval-mode) forward, on the RAW parameters.
# ----------------------------------------------------------------------------
def reference_forward(x, p):
    q = x @ p["wq"] + p["bq"]
    k = x @ p["wk"] + p["bk"]
    v = x @ p["wv"] + p["bv"]
    d_k = x.shape[-1]
    logits = jnp.einsum("bnc,bmc->bnm", q, k) / math.sqrt(d_k)
    attn = jax.nn.softmax(logits, axis=-1)
    vals = jnp.einsum("bnm,bmc->bnc", attn, v)
    x1 = (x + vals) * p["bn1_s"] + p["bn1_b"]
    h = jnp.maximum(x1 @ p["w1"] + p["b1"], 0.0)
    h = h * p["bn2_s"] + p["bn2_b"]
    g = h @ p["wr1"] + p["br1"]
    g = jnp.maximum(g * p["bn3_s"] + p["bn3_b"], 0.0)
    out = jax.nn.sigmoid(g @ p["wr2"] + p["br2"])
    return out[..., 0]


if __name__ == "__main__":
    # Small shapes consistent with the module: batch=2, seq=8 points,
    # input_dim=16, hidden_dim=(32, 16); num_heads is unused in forward.
    B, N, input_dim = 2, 8, 16
    hidden_dim = (32, 16)

    root = jax.random.PRNGKey(0)
    kx, kp = jax.random.split(root)
    x = jax.random.normal(kx, (B, N, input_dim), jnp.float32)
    params = make_params(input_dim, hidden_dim, kp)

    # One-time parameter fold/pack (build time, not per call).
    packed = fold_and_pack_params(params, input_dim, hidden_dim)

    y = transformer_conv_forward(x, packed)
    y = jax.block_until_ready(y)

    y_ref = reference_forward(x, params)
    assert y.shape == (B, N), y.shape
    max_err = float(jnp.max(jnp.abs(y - y_ref)))
    # Tolerance slightly looser than exact division because the softmax
    # normalisation uses the EUP approximate reciprocal.
    assert jnp.allclose(y, y_ref, rtol=2e-3, atol=2e-3), max_err

    print("KERNEL_OK")
</pallas_src>

<mosaic_0001>
module attributes {stable_mosaic.version = 11 : i64} {
  func.func @kernel(%arg0: memref<16x16xf32, #tpu.memory_space<vmem>>, %arg1: memref<16x48xf32, #tpu.memory_space<vmem>>, %arg2: memref<16x32xf32, #tpu.memory_space<vmem>>, %arg3: memref<32x16xf32, #tpu.memory_space<vmem>>, %arg4: memref<1x113xf32, #tpu.memory_space<vmem>>, %arg5: memref<1x16xf32, #tpu.memory_space<vmem>>) attributes {dimension_semantics = [], scalar_prefetch = 0 : i64, scratch_operands = 0 : i64, tpu.core_type = #tpu.core_type<tc>} {
    %c0 = arith.constant 0 : index
    %c0_0 = arith.constant 0 : index
    %0 = vector.load %arg0[%c0, %c0_0] : memref<16x16xf32, #tpu.memory_space<vmem>>, vector<16x16xf32>
    %c0_1 = arith.constant 0 : index
    %c0_2 = arith.constant 0 : index
    %1 = vector.load %arg4[%c0_1, %c0_2] : memref<1x113xf32, #tpu.memory_space<vmem>>, vector<1x113xf32>
    %2 = vector.extract_strided_slice %1 {offsets = [0, 0], sizes = [1, 48], strides = [1, 1]} : vector<1x113xf32> to vector<1x48xf32>
    %3 = vector.extract_strided_slice %1 {offsets = [0, 48], sizes = [1, 32], strides = [1, 1]} : vector<1x113xf32> to vector<1x32xf32>
    %4 = vector.extract_strided_slice %1 {offsets = [0, 80], sizes = [1, 16], strides = [1, 1]} : vector<1x113xf32> to vector<1x16xf32>
    %5 = vector.extract_strided_slice %1 {offsets = [0, 96], sizes = [1, 16], strides = [1, 1]} : vector<1x113xf32> to vector<1x16xf32>
    %6 = vector.extract_strided_slice %1 {offsets = [0, 112], sizes = [1, 1], strides = [1, 1]} : vector<1x113xf32> to vector<1x1xf32>
    %c0_3 = arith.constant 0 : index
    %c0_4 = arith.constant 0 : index
    %7 = vector.load %arg1[%c0_3, %c0_4] : memref<16x48xf32, #tpu.memory_space<vmem>>, vector<16x48xf32>
    %cst = arith.constant dense<0.000000e+00> : vector<16x48xf32>
    %8 = tpu.matmul %0, %7, %cst {dimension_numbers = #tpu.dot_dimension_numbers<[1], [0], [0], [1], [0, 0, 1, 1], [], []>} : vector<16x16xf32>, vector<16x48xf32>, vector<16x48xf32> -> vector<16x48xf32>
    %9 = vector.broadcast %2 : vector<1x48xf32> to vector<16x48xf32>
    %10 = arith.addf %8, %9 : vector<16x48xf32>
    %11 = vector.extract_strided_slice %10 {offsets = [0, 0], sizes = [16, 16], strides = [1, 1]} : vector<16x48xf32> to vector<16x16xf32>
    %12 = vector.extract_strided_slice %10 {offsets = [0, 16], sizes = [16, 16], strides = [1, 1]} : vector<16x48xf32> to vector<16x16xf32>
    %13 = vector.extract_strided_slice %10 {offsets = [0, 32], sizes = [16, 16], strides = [1, 1]} : vector<16x48xf32> to vector<16x16xf32>
    %14 = vector.extract_strided_slice %11 {offsets = [0, 0], sizes = [8, 16], strides = [1, 1]} : vector<16x16xf32> to vector<8x16xf32>
    %15 = vector.extract_strided_slice %12 {offsets = [0, 0], sizes = [8, 16], strides = [1, 1]} : vector<16x16xf32> to vector<8x16xf32>
    %16 = vector.extract_strided_slice %13 {offsets = [0, 0], sizes = [8, 16], strides = [1, 1]} : vector<16x16xf32> to vector<8x16xf32>
    %cst_5 = arith.constant dense<0.000000e+00> : vector<8x8xf32>
    %17 = tpu.matmul %14, %15, %cst_5 {dimension_numbers = #tpu.dot_dimension_numbers<[1], [1], [0], [0], [0, 0, 1, 0], [], []>} : vector<8x16xf32>, vector<8x16xf32>, vector<8x8xf32> -> vector<8x8xf32>
    %cst_6 = arith.constant dense<0xFF800000> : vector<8xf32>
    %18 = vector.multi_reduction <maximumf>, %17, %cst_6 [1] : vector<8x8xf32> to vector<8xf32>
    %19 = vector.shape_cast %18 : vector<8xf32> to vector<8x1xf32>
    %20 = vector.broadcast %19 : vector<8x1xf32> to vector<8x8xf32>
    %21 = arith.subf %17, %20 : vector<8x8xf32>
    %22 = math.exp %21 : vector<8x8xf32>
    %cst_7 = arith.constant dense<0.000000e+00> : vector<8xf32>
    %23 = vector.multi_reduction <add>, %22, %cst_7 [1] : vector<8x8xf32> to vector<8xf32>
    %24 = vector.shape_cast %23 : vector<8xf32> to vector<8x1xf32>
    %cst_8 = arith.constant dense<0.000000e+00> : vector<8x16xf32>
    %25 = tpu.matmul %22, %16, %cst_8 {dimension_numbers = #tpu.dot_dimension_numbers<[1], [0], [0], [1], [0, 0, 1, 1], [], []>} : vector<8x8xf32>, vector<8x16xf32>, vector<8x16xf32> -> vector<8x16xf32>
    %26 = tpu.reciprocal %24 {approx = true} : vector<8x1xf32> -> vector<8x1xf32>
    %27 = vector.broadcast %26 : vector<8x1xf32> to vector<8x16xf32>
    %28 = arith.mulf %25, %27 : vector<8x16xf32>
    %29 = vector.extract_strided_slice %11 {offsets = [8, 0], sizes = [8, 16], strides = [1, 1]} : vector<16x16xf32> to vector<8x16xf32>
    %30 = vector.extract_strided_slice %12 {offsets = [8, 0], sizes = [8, 16], strides = [1, 1]} : vector<16x16xf32> to vector<8x16xf32>
    %31 = vector.extract_strided_slice %13 {offsets = [8, 0], sizes = [8, 16], strides = [1, 1]} : vector<16x16xf32> to vector<8x16xf32>
    %cst_9 = arith.constant dense<0.000000e+00> : vector<8x8xf32>
    %32 = tpu.matmul %29, %30, %cst_9 {dimension_numbers = #tpu.dot_dimension_numbers<[1], [1], [0], [0], [0, 0, 1, 0], [], []>} : vector<8x16xf32>, vector<8x16xf32>, vector<8x8xf32> -> vector<8x8xf32>
    %cst_10 = arith.constant dense<0xFF800000> : vector<8xf32>
    %33 = vector.multi_reduction <maximumf>, %32, %cst_10 [1] : vector<8x8xf32> to vector<8xf32>
    %34 = vector.shape_cast %33 : vector<8xf32> to vector<8x1xf32>
    %35 = vector.broadcast %34 : vector<8x1xf32> to vector<8x8xf32>
    %36 = arith.subf %32, %35 : vector<8x8xf32>
    %37 = math.exp %36 : vector<8x8xf32>
    %cst_11 = arith.constant dense<0.000000e+00> : vector<8xf32>
    %38 = vector.multi_reduction <add>, %37, %cst_11 [1] : vector<8x8xf32> to vector<8xf32>
    %39 = vector.shape_cast %38 : vector<8xf32> to vector<8x1xf32>
    %cst_12 = arith.constant dense<0.000000e+00> : vector<8x16xf32>
    %40 = tpu.matmul %37, %31, %cst_12 {dimension_numbers = #tpu.dot_dimension_numbers<[1], [0], [0], [1], [0, 0, 1, 1], [], []>} : vector<8x8xf32>, vector<8x16xf32>, vector<8x16xf32> -> vector<8x16xf32>
    %41 = tpu.reciprocal %39 {approx = true} : vector<8x1xf32> -> vector<8x1xf32>
    %42 = vector.broadcast %41 : vector<8x1xf32> to vector<8x16xf32>
    %43 = arith.mulf %40, %42 : vector<8x16xf32>
    %44 = tpu.concatenate %28, %43 in 0 : vector<8x16xf32>, vector<8x16xf32> -> vector<16x16xf32>
    %45 = arith.addf %0, %44 : vector<16x16xf32>
    %c0_13 = arith.constant 0 : index
    %c0_14 = arith.constant 0 : index
    %46 = vector.load %arg2[%c0_13, %c0_14] : memref<16x32xf32, #tpu.memory_space<vmem>>, vector<16x32xf32>
    %cst_15 = arith.constant dense<0.000000e+00> : vector<16x32xf32>
    %47 = tpu.matmul %45, %46, %cst_15 {dimension_numbers = #tpu.dot_dimension_numbers<[1], [0], [0], [1], [0, 0, 1, 1], [], []>} : vector<16x16xf32>, vector<16x32xf32>, vector<16x32xf32> -> vector<16x32xf32>
    %48 = vector.broadcast %3 : vector<1x32xf32> to vector<16x32xf32>
    %49 = arith.addf %47, %48 : vector<16x32xf32>
    %cst_16 = arith.constant 0.000000e+00 : f32
    %50 = vector.broadcast %cst_16 : f32 to vector<16x32xf32>
    %51 = arith.maximumf %49, %50 : vector<16x32xf32>
    %c0_17 = arith.constant 0 : index
    %c0_18 = arith.constant 0 : index
    %52 = vector.load %arg3[%c0_17, %c0_18] : memref<32x16xf32, #tpu.memory_space<vmem>>, vector<32x16xf32>
    %cst_19 = arith.constant dense<0.000000e+00> : vector<16x16xf32>
    %53 = tpu.matmul %51, %52, %cst_19 {dimension_numbers = #tpu.dot_dimension_numbers<[1], [0], [0], [1], [0, 0, 1, 1], [], []>} : vector<16x32xf32>, vector<32x16xf32>, vector<16x16xf32> -> vector<16x16xf32>
    %54 = vector.broadcast %4 : vector<1x16xf32> to vector<16x16xf32>
    %55 = arith.addf %53, %54 : vector<16x16xf32>
    %cst_20 = arith.constant 0.000000e+00 : f32
    %56 = vector.broadcast %cst_20 : f32 to vector<16x16xf32>
    %57 = arith.maximumf %55, %56 : vector<16x16xf32>
    %cst_21 = arith.constant dense<0.000000e+00> : vector<1x16xf32>
    %58 = tpu.matmul %5, %57, %cst_21 {dimension_numbers = #tpu.dot_dimension_numbers<[1], [1], [0], [0], [0, 0, 1, 0], [], []>} : vector<1x16xf32>, vector<16x16xf32>, vector<1x16xf32> -> vector<1x16xf32>
    %59 = vector.broadcast %6 : vector<1x1xf32> to vector<1x16xf32>
    %60 = arith.addf %58, %59 : vector<1x16xf32>
    %61 = arith.negf %60 : vector<1x16xf32>
    %62 = math.exp %61 : vector<1x16xf32>
    %cst_22 = arith.constant 1.000000e+00 : f32
    %63 = vector.broadcast %cst_22 : f32 to vector<1x16xf32>
    %64 = arith.addf %63, %62 : vector<1x16xf32>
    %65 = arith.divf %63, %64 : vector<1x16xf32>
    %c0_23 = arith.constant 0 : index
    %c0_24 = arith.constant 0 : index
    %66 = vector.load %arg5[%c0_23, %c0_24] : memref<1x16xf32, #tpu.memory_space<vmem>>, vector<1x16xf32>
    tpu.vector_store %arg5[%c0_23, %c0_24], %65 {strides = array<i32>} : memref<1x16xf32, #tpu.memory_space<vmem>>, vector<1x16xf32>,
    return
  }
}

</mosaic_0001>

<llo_original>
// kernel: tpu_custom_call.1
$region0: #{tpu_custom_call.1}
  #allocation0 [shape = 'u32[]', space=smem, size = 0x4, offset = 0x4, fixed_abs, tag = 'smem constant byte address 0x4 - core index']
  #allocation1 [shape = 'u32[144,128]{1,0:T(1,128)}', space=vmem, size = 0x12000, scoped, tag = 'internal scratch']
  %s0 = inlined_call_operand.vmem [shape: f32[16,16], index: 0, kind: input, shape index: {}]
  %s1 = inlined_call_operand.vmem [shape: f32[16,48], index: 1, kind: input, shape index: {}]
  %s2 = inlined_call_operand.vmem [shape: f32[16,32], index: 2, kind: input, shape index: {}]
  %s3 = inlined_call_operand.vmem [shape: f32[32,16], index: 3, kind: input, shape index: {}]
  %s4 = inlined_call_operand.vmem [shape: f32[1,113], index: 4, kind: input, shape index: {}]
  %s5 = inlined_call_operand.hbm [shape: f32[1,16], index: 5, kind: output, shape index: {}]
  %s6 = sld [smem:[#allocation0]]
  $region30: #{tpu_custom_call.1} parent=0
    _
  %s8 = ssub.s32 1, %s6
  %s9 = scalar_select 0, %s8, %s6
  $region1: #{tpu_custom_call.1} parent=0
    #allocation2 [shape = 'u8[512]{0}', space=vmem, size = 0x400, scoped, tag = 'output window, operand 0, single buffered']
    #allocation3 [shape = 's32[1]{0}', space=sflag, size = 0x4, scoped, tag = 'scoped memory for tpu_custom_call.1']
    %10 = vsyncpa [#allocation3], 0
    // Predicated region
    $region2: #{tpu_custom_call.1} parent=1 // pred_check
      _
    $region3: #{tpu_custom_call.1} parent=1 // pred_check_branch
      %12 = sbr.rel (0) target = $region5
    $region4: #{tpu_custom_call.1} parent=1 // pred_region
      _
    $region5: #{tpu_custom_call.1} parent=1 // pred_fallthru
      _
    // Predicated region
    $region6: #{tpu_custom_call.1} parent=1 // pred_check
      _
    $region7: #{tpu_custom_call.1} parent=1 // pred_check_branch
      %14 = sbr.rel (0) target = $region9
    $region8: #{tpu_custom_call.1} parent=1 // pred_region
      _
    $region9: #{tpu_custom_call.1} parent=1 // pred_fallthru
      _
    // Predicated region
    $region10: #{tpu_custom_call.1} parent=1 // pred_check
      _
    $region11: #{tpu_custom_call.1} parent=1 // pred_check_branch
      %16 = sbr.rel (0) target = $region13
    $region12: #{tpu_custom_call.1} parent=1 // pred_region
      _
    $region13: #{tpu_custom_call.1} parent=1 // pred_fallthru
      _
    // Predicated region
    $region14: #{tpu_custom_call.1} parent=1 // pred_check
      _
    $region15: #{tpu_custom_call.1} parent=1 // pred_check_branch
      %18 = sbr.rel (0) target = $region17
    $region16: #{tpu_custom_call.1} parent=1 // pred_region
      _
    $region17: #{tpu_custom_call.1} parent=1 // pred_fallthru
      _
    // Predicated region
    $region18: #{tpu_custom_call.1} parent=1 // pred_check
      _
    $region19: #{tpu_custom_call.1} parent=1 // pred_check_branch
      %20 = sbr.rel (0) target = $region21
    $region20: #{tpu_custom_call.1} parent=1 // pred_region
      _
    $region21: #{tpu_custom_call.1} parent=1 // pred_fallthru
      _
    %v21 = vld [vmem:[%s0] sm:$0xff]
    %v22 = vld [vmem:[%s0 + $0x8] sm:$0xff]
    %v23 = vld [vmem:[%s4] sm:$0x1]
    %v24 = vld [vmem:[%s1] sm:$0xff]
    %v25 = vld [vmem:[%s1 + $0x8] sm:$0xff]
    %v27 = vlaneseq
    %v28 = vshrl.u32 %v27, 7
    %v29 = vsub.s32 0, %v28
    %v30 = vrot.slane %v23, %v29
    %vm32 = vcmask 130048
    %v34 = vsel %vm32, %v21, 0
    %v37 = vsel %vm32, %v22, 0
    %39 = vmatprep.subr.mxu0 0.0
    %40 = vmatpush1.msra.mxu0 %v24
    %41 = vmatprep.subr.mxu0 0.0
    %42 = vmatpush1.msra.mxu0 %v25
    %43 = vmatprep.subr.mxu0 0.0
    %44 = vmatpush1.msra.mxu0 0.0
    %45 = vmatprep.subr.mxu0 0.0
    %46 = vmatpush1.msra.mxu0 0.0
    %47 = vmatprep.subr.mxu0 0.0
    %48 = vmatpush1.msra.mxu0 0.0
    %49 = vmatprep.subr.mxu0 0.0
    %50 = vmatpush1.msra.mxu0 0.0
    %51 = vmatprep.subr.mxu0 0.0
    %52 = vmatpush1.msra.mxu0 0.0
    %53 = vmatprep.subr.mxu0 0.0
    %54 = vmatpush1.msra.mxu0 0.0
    %55 = vmatprep.subr.mxu0 0.0
    %56 = vmatpush1.msra.mxu0 0.0
    %57 = vmatprep.subr.mxu0 0.0
    %58 = vmatpush1.msra.mxu0 0.0
    %59 = vmatprep.subr.mxu0 0.0
    %60 = vmatpush1.msra.mxu0 0.0
    %61 = vmatprep.subr.mxu0 0.0
    %62 = vmatpush1.msra.mxu0 0.0
    %63 = vmatprep.subr.mxu0 0.0
    %64 = vmatpush1.msra.mxu0 0.0
    %65 = vmatprep.subr.mxu0 0.0
    %66 = vmatpush1.msra.mxu0 0.0
    %67 = vmatprep.subr.mxu0 0.0
    %68 = vmatpush1.msra.mxu0 0.0
    %69 = vmatprep.subr.mxu0 0.0
    %70 = vmatpush1.msra.mxu0 0.0
    %71 = vmatprep.subr.mxu0 0.0
    %72 = vmatpush1.msra.mxu0 0.0
    %73 = vmatprep.subr.mxu0 0.0
    %74 = vmatpush1.msra.mxu0 0.0
    %75 = vmatprep.subr.mxu0 0.0
    %76 = vmatpush1.msra.mxu0 0.0
    %77 = vmatprep.subr.mxu0 0.0
    %78 = vmatpush1.msra.mxu0 0.0
    %79 = vmatprep.subr.mxu0 0.0
    %80 = vmatpush1.msra.mxu0 0.0
    %81 = vmatprep.subr.mxu0 0.0
    %82 = vmatpush1.msra.mxu0 0.0
    %83 = vmatprep.subr.mxu0 0.0
    %84 = vmatpush1.msra.mxu0 0.0
    %85 = vmatprep.subr.mxu0 0.0
    %86 = vmatpush1.msra.mxu0 0.0
    %87 = vmatprep.subr.mxu0 0.0
    %88 = vmatpush1.msra.mxu0 0.0
    %89 = vmatprep.subr.mxu0 0.0
    %90 = vmatpush1.msra.mxu0 0.0
    %91 = vmatprep.subr.mxu0 0.0
    %92 = vmatpush1.msra.mxu0 0.0
    %93 = vmatprep.subr.mxu0 0.0
    %94 = vmatpush1.msra.mxu0 0.0
    %95 = vmatprep.subr.mxu0 0.0
    %96 = vmatpush1.msra.mxu0 0.0
    %97 = vmatprep.subr.mxu0 0.0
    %98 = vmatpush1.msra.mxu0 0.0
    %99 = vmatprep.subr.mxu0 0.0
    %100 = vmatpush1.msra.mxu0 0.0
    %101 = vmatprep.subr.mxu0 0.0
    %102 = vmatpush1.msra.mxu0 0.0
    %103 = vmatprep.mubr.f32.mxu0 0.0
    %104 = vmatmul.mubr.f32.gmra.mrb[0].mxu0 %v34
    %v105 = vpop.f32.mrb[0].mxu0
    %v106 = vadd.f32 %v30, %v105
    %v107 = vpop.f32.mrb[0].mxu0
    %108 = vmatprep.mubr.f32.mxu0 0.0
    %109 = vmatmul.mubr.f32.gmra.mrb[0].mxu0 %v37
    %v110 = vpop.f32.mrb[0].mxu0
    %v111 = vadd.f32 %v30, %v110
    %v112 = vpop.f32.mrb[0].mxu0
    %113 = vdwg.mxu0
    %115 = vrot.lane.b32.xlu0 %v106, 112
    %v116 = vpop.permute.xlu0 %115
    %v117 = vsel %vm32, %v106, 0
    %v119 = vsel %vm32, %v116, 0
    %121 = vmatprep.subr.mxu0 0.0
    %122 = vmatpush1.xpose.msra.mxu0 %v119
    %123 = vmatprep.subr.mxu0 0.0
    %124 = vmatpush1.xpose.msra.mxu0 0.0
    %125 = vmatprep.subr.mxu0 0.0
    %126 = vmatpush1.xpose.msra.mxu0 0.0
    %127 = vmatprep.subr.mxu0 0.0
    %128 = vmatpush1.xpose.msra.mxu0 0.0
    %129 = vmatprep.subr.mxu0 0.0
    %130 = vmatpush1.xpose.msra.mxu0 0.0
    %131 = vmatprep.subr.mxu0 0.0
    %132 = vmatpush1.xpose.msra.mxu0 0.0
    %133 = vmatprep.subr.mxu0 0.0
    %134 = vmatpush1.xpose.msra.mxu0 0.0
    %135 = vmatprep.subr.mxu0 0.0
    %136 = vmatpush1.xpose.msra.mxu0 0.0
    %137 = vmatprep.subr.mxu0 0.0
    %138 = vmatpush1.xpose.msra.mxu0 0.0
    %139 = vmatprep.subr.mxu0 0.0
    %140 = vmatpush1.xpose.msra.mxu0 0.0
    %141 = vmatprep.subr.mxu0 0.0
    %142 = vmatpush1.xpose.msra.mxu0 0.0
    %143 = vmatprep.subr.mxu0 0.0
    %144 = vmatpush1.xpose.msra.mxu0 0.0
    %145 = vmatprep.subr.mxu0 0.0
    %146 = vmatpush1.xpose.msra.mxu0 0.0
    %147 = vmatprep.subr.mxu0 0.0
    %148 = vmatpush1.xpose.msra.mxu0 0.0
    %149 = vmatprep.subr.mxu0 0.0
    %150 = vmatpush1.xpose.msra.mxu0 0.0
    %151 = vmatprep.subr.mxu0 0.0
    %152 = vmatpush1.xpose.msra.mxu0 0.0
    %153 = vmatprep.subr.mxu0 0.0
    %154 = vmatpush1.xpose.msra.mxu0 0.0
    %155 = vmatprep.subr.mxu0 0.0
    %156 = vmatpush1.xpose.msra.mxu0 0.0
    %157 = vmatprep.subr.mxu0 0.0
    %158 = vmatpush1.xpose.msra.mxu0 0.0
    %159 = vmatprep.subr.mxu0 0.0
    %160 = vmatpush1.xpose.msra.mxu0 0.0
    %161 = vmatprep.subr.mxu0 0.0
    %162 = vmatpush1.xpose.msra.mxu0 0.0
    %163 = vmatprep.subr.mxu0 0.0
    %164 = vmatpush1.xpose.msra.mxu0 0.0
    %165 = vmatprep.subr.mxu0 0.0
    %166 = vmatpush1.xpose.msra.mxu0 0.0
    %167 = vmatprep.subr.mxu0 0.0
    %168 = vmatpush1.xpose.msra.mxu0 0.0
    %169 = vmatprep.subr.mxu0 0.0
    %170 = vmatpush1.xpose.msra.mxu0 0.0
    %171 = vmatprep.subr.mxu0 0.0
    %172 = vmatpush1.xpose.msra.mxu0 0.0
    %173 = vmatprep.subr.mxu0 0.0
    %174 = vmatpush1.xpose.msra.mxu0 0.0
    %175 = vmatprep.subr.mxu0 0.0
    %176 = vmatpush1.xpose.msra.mxu0 0.0
    %177 = vmatprep.subr.mxu0 0.0
    %178 = vmatpush1.xpose.msra.mxu0 0.0
    %179 = vmatprep.subr.mxu0 0.0
    %180 = vmatpush1.xpose.msra.mxu0 0.0
    %181 = vmatprep.subr.mxu0 0.0
    %182 = vmatpush1.xpose.msra.mxu0 0.0
    %183 = vmatprep.subr.mxu0 0.0
    %184 = vmatpush1.xpose.msra.mxu0 0.0
    %185 = vmatprep.mubr.f32.mxu0 0.0
    %186 = vmatmul.mubr.f32.gmra.mrb[0].mxu0 %v117
    %v187 = vpop.f32.mrb[0].mxu0
    %v188 = vadd.f32 0.0, %v187
    %v189 = vpop.f32.mrb[0].mxu0
    %190 = vdwg.mxu0
    %vm191 = vcmask 64512
    %v192 = vsel %vm191, %v188, -inf
    %193 = vmax.xlane.f32.xlu0 %v192
    %v194 = vpop.xlane.xlu0 %193
    %v195 = vsub.f32 %v188, %v194
    %v196 = vmul.f32 %v195, 1.442695
    %v197 = vpow.pop %v196
    %v198 = vsel %vm191, %v197, 0.0
    %199 = vadd.xlane.f32.xlu0 %v198
    %v200 = vpop.xlane.xlu0 %199
    %201 = vrot.lane.b32.xlu0 %v106, 96
    %v202 = vpop.permute.xlu0 %201
    %v205 = vsel %vm191, %v197, 0
    %207 = vmatprep.subr.mxu0 0.0
    %208 = vmatpush1.msra.mxu0 %v202
    %209 = vmatprep.subr.mxu0 0.0
    %210 = vmatpush1.msra.mxu0 0.0
    %211 = vmatprep.subr.mxu0 0.0
    %212 = vmatpush1.msra.mxu0 0.0
    %213 = vmatprep.subr.mxu0 0.0
    %214 = vmatpush1.msra.mxu0 0.0
    %215 = vmatprep.subr.mxu0 0.0
    %216 = vmatpush1.msra.mxu0 0.0
    %217 = vmatprep.subr.mxu0 0.0
    %218 = vmatpush1.msra.mxu0 0.0
    %219 = vmatprep.subr.mxu0 0.0
    %220 = vmatpush1.msra.mxu0 0.0
    %221 = vmatprep.subr.mxu0 0.0
    %222 = vmatpush1.msra.mxu0 0.0
    %223 = vmatprep.subr.mxu0 0.0
    %224 = vmatpush1.msra.mxu0 0.0
    %225 = vmatprep.subr.mxu0 0.0
    %226 = vmatpush1.msra.mxu0 0.0
    %227 = vmatprep.subr.mxu0 0.0
    %228 = vmatpush1.msra.mxu0 0.0
    %229 = vmatprep.subr.mxu0 0.0
    %230 = vmatpush1.msra.mxu0 0.0
    %231 = vmatprep.subr.mxu0 0.0
    %232 = vmatpush1.msra.mxu0 0.0
    %233 = vmatprep.subr.mxu0 0.0
    %234 = vmatpush1.msra.mxu0 0.0
    %235 = vmatprep.subr.mxu0 0.0
    %236 = vmatpush1.msra.mxu0 0.0
    %237 = vmatprep.subr.mxu0 0.0
    %238 = vmatpush1.msra.mxu0 0.0
    %239 = vmatprep.subr.mxu0 0.0
    %240 = vmatpush1.msra.mxu0 0.0
    %241 = vmatprep.subr.mxu0 0.0
    %242 = vmatpush1.msra.mxu0 0.0
    %243 = vmatprep.subr.mxu0 0.0
    %244 = vmatpush1.msra.mxu0 0.0
    %245 = vmatprep.subr.mxu0 0.0
    %246 = vmatpush1.msra.mxu0 0.0
    %247 = vmatprep.subr.mxu0 0.0
    %248 = vmatpush1.msra.mxu0 0.0
    %249 = vmatprep.subr.mxu0 0.0
    %250 = vmatpush1.msra.mxu0 0.0
    %251 = vmatprep.subr.mxu0 0.0
    %252 = vmatpush1.msra.mxu0 0.0
    %253 = vmatprep.subr.mxu0 0.0
    %254 = vmatpush1.msra.mxu0 0.0
    %255 = vmatprep.subr.mxu0 0.0
    %256 = vmatpush1.msra.mxu0 0.0
    %257 = vmatprep.subr.mxu0 0.0
    %258 = vmatpush1.msra.mxu0 0.0
    %259 = vmatprep.subr.mxu0 0.0
    %260 = vmatpush1.msra.mxu0 0.0
    %261 = vmatprep.subr.mxu0 0.0
    %262 = vmatpush1.msra.mxu0 0.0
    %263 = vmatprep.subr.mxu0 0.0
    %264 = vmatpush1.msra.mxu0 0.0
    %265 = vmatprep.subr.mxu0 0.0
    %266 = vmatpush1.msra.mxu0 0.0
    %267 = vmatprep.subr.mxu0 0.0
    %268 = vmatpush1.msra.mxu0 0.0
    %269 = vmatprep.subr.mxu0 0.0
    %270 = vmatpush1.msra.mxu0 0.0
    %271 = vmatprep.mubr.f32.mxu0 0.0
    %272 = vmatmul.mubr.f32.gmra.mrb[0].mxu0 %v205
    %v273 = vpop.f32.mrb[0].mxu0
    %v274 = vadd.f32 0.0, %v273
    %v275 = vpop.f32.mrb[0].mxu0
    %276 = vdwg.mxu0
    %v277 = vrcp.pop %v200
    %v278 = vmul.f32 %v274, %v277
    %280 = vrot.lane.b32.xlu0 %v111, 112
    %v281 = vpop.permute.xlu0 %280
    %v282 = vsel %vm32, %v111, 0
    %v284 = vsel %vm32, %v281, 0
    %286 = vmatprep.subr.mxu0 0.0
    %287 = vmatpush1.xpose.msra.mxu0 %v284
    %288 = vmatprep.subr.mxu0 0.0
    %289 = vmatpush1.xpose.msra.mxu0 0.0
    %290 = vmatprep.subr.mxu0 0.0
    %291 = vmatpush1.xpose.msra.mxu0 0.0
    %292 = vmatprep.subr.mxu0 0.0
    %293 = vmatpush1.xpose.msra.mxu0 0.0
    %294 = vmatprep.subr.mxu0 0.0
    %295 = vmatpush1.xpose.msra.mxu0 0.0
    %296 = vmatprep.subr.mxu0 0.0
    %297 = vmatpush1.xpose.msra.mxu0 0.0
    %298 = vmatprep.subr.mxu0 0.0
    %299 = vmatpush1.xpose.msra.mxu0 0.0
    %300 = vmatprep.subr.mxu0 0.0
    %301 = vmatpush1.xpose.msra.mxu0 0.0
    %302 = vmatprep.subr.mxu0 0.0
    %303 = vmatpush1.xpose.msra.mxu0 0.0
    %304 = vmatprep.subr.mxu0 0.0
    %305 = vmatpush1.xpose.msra.mxu0 0.0
    %306 = vmatprep.subr.mxu0 0.0
    %307 = vmatpush1.xpose.msra.mxu0 0.0
    %308 = vmatprep.subr.mxu0 0.0
    %309 = vmatpush1.xpose.msra.mxu0 0.0
    %310 = vmatprep.subr.mxu0 0.0
    %311 = vmatpush1.xpose.msra.mxu0 0.0
    %312 = vmatprep.subr.mxu0 0.0
    %313 = vmatpush1.xpose.msra.mxu0 0.0
    %314 = vmatprep.subr.mxu0 0.0
    %315 = vmatpush1.xpose.msra.mxu0 0.0
    %316 = vmatprep.subr.mxu0 0.0
    %317 = vmatpush1.xpose.msra.mxu0 0.0
    %318 = vmatprep.subr.mxu0 0.0
    %319 = vmatpush1.xpose.msra.mxu0 0.0
    %320 = vmatprep.subr.mxu0 0.0
    %321 = vmatpush1.xpose.msra.mxu0 0.0
    %322 = vmatprep.subr.mxu0 0.0
    %323 = vmatpush1.xpose.msra.mxu0 0.0
    %324 = vmatprep.subr.mxu0 0.0
    %325 = vmatpush1.xpose.msra.mxu0 0.0
    %326 = vmatprep.subr.mxu0 0.0
    %327 = vmatpush1.xpose.msra.mxu0 0.0
    %328 = vmatprep.subr.mxu0 0.0
    %329 = vmatpush1.xpose.msra.mxu0 0.0
    %330 = vmatprep.subr.mxu0 0.0
    %331 = vmatpush1.xpose.msra.mxu0 0.0
    %332 = vmatprep.subr.mxu0 0.0
    %333 = vmatpush1.xpose.msra.mxu0 0.0
    %334 = vmatprep.subr.mxu0 0.0
    %335 = vmatpush1.xpose.msra.mxu0 0.0
    %336 = vmatprep.subr.mxu0 0.0
    %337 = vmatpush1.xpose.msra.mxu0 0.0
    %338 = vmatprep.subr.mxu0 0.0
    %339 = vmatpush1.xpose.msra.mxu0 0.0
    %340 = vmatprep.subr.mxu0 0.0
    %341 = vmatpush1.xpose.msra.mxu0 0.0
    %342 = vmatprep.subr.mxu0 0.0
    %343 = vmatpush1.xpose.msra.mxu0 0.0
    %344 = vmatprep.subr.mxu0 0.0
    %345 = vmatpush1.xpose.msra.mxu0 0.0
    %346 = vmatprep.subr.mxu0 0.0
    %347 = vmatpush1.xpose.msra.mxu0 0.0
    %348 = vmatprep.subr.mxu0 0.0
    %349 = vmatpush1.xpose.msra.mxu0 0.0
    %350 = vmatprep.mubr.f32.mxu0 0.0
    %351 = vmatmul.mubr.f32.gmra.mrb[0].mxu0 %v282
    %v352 = vpop.f32.mrb[0].mxu0
    %v353 = vadd.f32 0.0, %v352
    %v354 = vpop.f32.mrb[0].mxu0
    %355 = vdwg.mxu0
    %v356 = vsel %vm191, %v353, -inf
    %357 = vmax.xlane.f32.xlu0 %v356
    %v358 = vpop.xlane.xlu0 %357
    %v359 = vsub.f32 %v353, %v358
    %v360 = vmul.f32 %v359, 1.442695
    %v361 = vpow.pop %v360
    %v362 = vsel %vm191, %v361, 0.0
    %363 = vadd.xlane.f32.xlu0 %v362
    %v364 = vpop.xlane.xlu0 %363
    %365 = vrot.lane.b32.xlu0 %v111, 96
    %v366 = vpop.permute.xlu0 %365
    %v369 = vsel %vm191, %v361, 0
    %371 = vmatprep.subr.mxu0 0.0
    %372 = vmatpush1.msra.mxu0 %v366
    %373 = vmatprep.subr.mxu0 0.0
    %374 = vmatpush1.msra.mxu0 0.0
    %375 = vmatprep.subr.mxu0 0.0
    %376 = vmatpush1.msra.mxu0 0.0
    %377 = vmatprep.subr.mxu0 0.0
    %378 = vmatpush1.msra.mxu0 0.0
    %379 = vmatprep.subr.mxu0 0.0
    %380 = vmatpush1.msra.mxu0 0.0
    %381 = vmatprep.subr.mxu0 0.0
    %382 = vmatpush1.msra.mxu0 0.0
    %383 = vmatprep.subr.mxu0 0.0
    %384 = vmatpush1.msra.mxu0 0.0
    %385 = vmatprep.subr.mxu0 0.0
    %386 = vmatpush1.msra.mxu0 0.0
    %387 = vmatprep.subr.mxu0 0.0
    %388 = vmatpush1.msra.mxu0 0.0
    %389 = vmatprep.subr.mxu0 0.0
    %390 = vmatpush1.msra.mxu0 0.0
    %391 = vmatprep.subr.mxu0 0.0
    %392 = vmatpush1.msra.mxu0 0.0
    %393 = vmatprep.subr.mxu0 0.0
    %394 = vmatpush1.msra.mxu0 0.0
    %395 = vmatprep.subr.mxu0 0.0
    %396 = vmatpush1.msra.mxu0 0.0
    %397 = vmatprep.subr.mxu0 0.0
    %398 = vmatpush1.msra.mxu0 0.0
    %399 = vmatprep.subr.mxu0 0.0
    %400 = vmatpush1.msra.mxu0 0.0
    %401 = vmatprep.subr.mxu0 0.0
    %402 = vmatpush1.msra.mxu0 0.0
    %403 = vmatprep.subr.mxu0 0.0
    %404 = vmatpush1.msra.mxu0 0.0
    %405 = vmatprep.subr.mxu0 0.0
    %406 = vmatpush1.msra.mxu0 0.0
    %407 = vmatprep.subr.mxu0 0.0
    %408 = vmatpush1.msra.mxu0 0.0
    %409 = vmatprep.subr.mxu0 0.0
    %410 = vmatpush1.msra.mxu0 0.0
    %411 = vmatprep.subr.mxu0 0.0
    %412 = vmatpush1.msra.mxu0 0.0
    %413 = vmatprep.subr.mxu0 0.0
    %414 = vmatpush1.msra.mxu0 0.0
    %415 = vmatprep.subr.mxu0 0.0
    %416 = vmatpush1.msra.mxu0 0.0
    %417 = vmatprep.subr.mxu0 0.0
    %418 = vmatpush1.msra.mxu0 0.0
    %419 = vmatprep.subr.mxu0 0.0
    %420 = vmatpush1.msra.mxu0 0.0
    %421 = vmatprep.subr.mxu0 0.0
    %422 = vmatpush1.msra.mxu0 0.0
    %423 = vmatprep.subr.mxu0 0.0
    %424 = vmatpush1.msra.mxu0 0.0
    %425 = vmatprep.subr.mxu0 0.0
    %426 = vmatpush1.msra.mxu0 0.0
    %427 = vmatprep.subr.mxu0 0.0
    %428 = vmatpush1.msra.mxu0 0.0
    %429 = vmatprep.subr.mxu0 0.0
    %430 = vmatpush1.msra.mxu0 0.0
    %431 = vmatprep.subr.mxu0 0.0
    %432 = vmatpush1.msra.mxu0 0.0
    %433 = vmatprep.subr.mxu0 0.0
    %434 = vmatpush1.msra.mxu0 0.0
    %435 = vmatprep.mubr.f32.mxu0 0.0
    %436 = vmatmul.mubr.f32.gmra.mrb[0].mxu0 %v369
    %v437 = vpop.f32.mrb[0].mxu0
    %v438 = vadd.f32 0.0, %v437
    %v439 = vpop.f32.mrb[0].mxu0
    %440 = vdwg.mxu0
    %v441 = vrcp.pop %v364
    %v442 = vmul.f32 %v438, %v441
    %v443 = vadd.f32 %v21, %v278
    %v444 = vadd.f32 %v22, %v442
    %v445 = vld [vmem:[%s2] sm:$0xff]
    %v446 = vld [vmem:[%s2 + $0x8] sm:$0xff]
    %447 = vrot.lane.b32.xlu0 %v30, 80
    %v448 = vpop.permute.xlu0 %447
    %v451 = vsel %vm32, %v443, 0
    %v454 = vsel %vm32, %v444, 0
    %456 = vmatprep.subr.mxu0 0.0
    %457 = vmatpush1.msra.mxu0 %v445
    %458 = vmatprep.subr.mxu0 0.0
    %459 = vmatpush1.msra.mxu0 %v446
    %460 = vmatprep.subr.mxu0 0.0
    %461 = vmatpush1.msra.mxu0 0.0
    %462 = vmatprep.subr.mxu0 0.0
    %463 = vmatpush1.msra.mxu0 0.0
    %464 = vmatprep.subr.mxu0 0.0
    %465 = vmatpush1.msra.mxu0 0.0
    %466 = vmatprep.subr.mxu0 0.0
    %467 = vmatpush1.msra.mxu0 0.0
    %468 = vmatprep.subr.mxu0 0.0
    %469 = vmatpush1.msra.mxu0 0.0
    %470 = vmatprep.subr.mxu0 0.0
    %471 = vmatpush1.msra.mxu0 0.0
    %472 = vmatprep.subr.mxu0 0.0
    %473 = vmatpush1.msra.mxu0 0.0
    %474 = vmatprep.subr.mxu0 0.0
    %475 = vmatpush1.msra.mxu0 0.0
    %476 = vmatprep.subr.mxu0 0.0
    %477 = vmatpush1.msra.mxu0 0.0
    %478 = vmatprep.subr.mxu0 0.0
    %479 = vmatpush1.msra.mxu0 0.0
    %480 = vmatprep.subr.mxu0 0.0
    %481 = vmatpush1.msra.mxu0 0.0
    %482 = vmatprep.subr.mxu0 0.0
    %483 = vmatpush1.msra.mxu0 0.0
    %484 = vmatprep.subr.mxu0 0.0
    %485 = vmatpush1.msra.mxu0 0.0
    %486 = vmatprep.subr.mxu0 0.0
    %487 = vmatpush1.msra.mxu0 0.0
    %488 = vmatprep.subr.mxu0 0.0
    %489 = vmatpush1.msra.mxu0 0.0
    %490 = vmatprep.subr.mxu0 0.0
    %491 = vmatpush1.msra.mxu0 0.0
    %492 = vmatprep.subr.mxu0 0.0
    %493 = vmatpush1.msra.mxu0 0.0
    %494 = vmatprep.subr.mxu0 0.0
    %495 = vmatpush1.msra.mxu0 0.0
    %496 = vmatprep.subr.mxu0 0.0
    %497 = vmatpush1.msra.mxu0 0.0
    %498 = vmatprep.subr.mxu0 0.0
    %499 = vmatpush1.msra.mxu0 0.0
    %500 = vmatprep.subr.mxu0 0.0
    %501 = vmatpush1.msra.mxu0 0.0
    %502 = vmatprep.subr.mxu0 0.0
    %503 = vmatpush1.msra.mxu0 0.0
    %504 = vmatprep.subr.mxu0 0.0
    %505 = vmatpush1.msra.mxu0 0.0
    %506 = vmatprep.subr.mxu0 0.0
    %507 = vmatpush1.msra.mxu0 0.0
    %508 = vmatprep.subr.mxu0 0.0
    %509 = vmatpush1.msra.mxu0 0.0
    %510 = vmatprep.subr.mxu0 0.0
    %511 = vmatpush1.msra.mxu0 0.0
    %512 = vmatprep.subr.mxu0 0.0
    %513 = vmatpush1.msra.mxu0 0.0
    %514 = vmatprep.subr.mxu0 0.0
    %515 = vmatpush1.msra.mxu0 0.0
    %516 = vmatprep.subr.mxu0 0.0
    %517 = vmatpush1.msra.mxu0 0.0
    %518 = vmatprep.subr.mxu0 0.0
    %519 = vmatpush1.msra.mxu0 0.0
    %520 = vmatprep.mubr.f32.mxu0 0.0
    %521 = vmatmul.mubr.f32.gmra.mrb[0].mxu0 %v451
    %v522 = vpop.f32.mrb[0].mxu0
    %v523 = vadd.f32 %v448, %v522
    %v524 = vpop.f32.mrb[0].mxu0
    %525 = vmatprep.mubr.f32.mxu0 0.0
    %526 = vmatmul.mubr.f32.gmra.mrb[0].mxu0 %v454
    %v527 = vpop.f32.mrb[0].mxu0
    %v528 = vadd.f32 %v448, %v527
    %v529 = vpop.f32.mrb[0].mxu0
    %530 = vdwg.mxu0
    %v531 = vmax.f32 %v523, 0.0
    %v532 = vmax.f32 %v528, 0.0
    %v533 = vld [vmem:[%s3] sm:$0xff]
    %v534 = vld [vmem:[%s3 + $0x8] sm:$0xff]
    %v535 = vld [vmem:[%s3 + $0x10] sm:$0xff]
    %v536 = vld [vmem:[%s3 + $0x18] sm:$0xff]
    %537 = vrot.lane.b32.xlu0 %v30, 48
    %v538 = vpop.permute.xlu0 %537
    %vm540 = vcmask 261120
    %v542 = vsel %vm540, %v531, 0
    %v545 = vsel %vm540, %v532, 0
    %547 = vmatprep.subr.mxu0 0.0
    %548 = vmatpush1.msra.mxu0 %v533
    %549 = vmatprep.subr.mxu0 0.0
    %550 = vmatpush1.msra.mxu0 %v534
    %551 = vmatprep.subr.mxu0 0.0
    %552 = vmatpush1.msra.mxu0 %v535
    %553 = vmatprep.subr.mxu0 0.0
    %554 = vmatpush1.msra.mxu0 %v536
    %555 = vmatprep.subr.mxu0 0.0
    %556 = vmatpush1.msra.mxu0 0.0
    %557 = vmatprep.subr.mxu0 0.0
    %558 = vmatpush1.msra.mxu0 0.0
    %559 = vmatprep.subr.mxu0 0.0
    %560 = vmatpush1.msra.mxu0 0.0
    %561 = vmatprep.subr.mxu0 0.0
    %562 = vmatpush1.msra.mxu0 0.0
    %563 = vmatprep.subr.mxu0 0.0
    %564 = vmatpush1.msra.mxu0 0.0
    %565 = vmatprep.subr.mxu0 0.0
    %566 = vmatpush1.msra.mxu0 0.0
    %567 = vmatprep.subr.mxu0 0.0
    %568 = vmatpush1.msra.mxu0 0.0
    %569 = vmatprep.subr.mxu0 0.0
    %570 = vmatpush1.msra.mxu0 0.0
    %571 = vmatprep.subr.mxu0 0.0
    %572 = vmatpush1.msra.mxu0 0.0
    %573 = vmatprep.subr.mxu0 0.0
    %574 = vmatpush1.msra.mxu0 0.0
    %575 = vmatprep.subr.mxu0 0.0
    %576 = vmatpush1.msra.mxu0 0.0
    %577 = vmatprep.subr.mxu0 0.0
    %578 = vmatpush1.msra.mxu0 0.0
    %579 = vmatprep.subr.mxu0 0.0
    %580 = vmatpush1.msra.mxu0 0.0
    %581 = vmatprep.subr.mxu0 0.0
    %582 = vmatpush1.msra.mxu0 0.0
    %583 = vmatprep.subr.mxu0 0.0
    %584 = vmatpush1.msra.mxu0 0.0
    %585 = vmatprep.subr.mxu0 0.0
    %586 = vmatpush1.msra.mxu0 0.0
    %587 = vmatprep.subr.mxu0 0.0
    %588 = vmatpush1.msra.mxu0 0.0
    %589 = vmatprep.subr.mxu0 0.0
    %590 = vmatpush1.msra.mxu0 0.0
    %591 = vmatprep.subr.mxu0 0.0
    %592 = vmatpush1.msra.mxu0 0.0
    %593 = vmatprep.subr.mxu0 0.0
    %594 = vmatpush1.msra.mxu0 0.0
    %595 = vmatprep.subr.mxu0 0.0
    %596 = vmatpush1.msra.mxu0 0.0
    %597 = vmatprep.subr.mxu0 0.0
    %598 = vmatpush1.msra.mxu0 0.0
    %599 = vmatprep.subr.mxu0 0.0
    %600 = vmatpush1.msra.mxu0 0.0
    %601 = vmatprep.subr.mxu0 0.0
    %602 = vmatpush1.msra.mxu0 0.0
    %603 = vmatprep.subr.mxu0 0.0
    %604 = vmatpush1.msra.mxu0 0.0
    %605 = vmatprep.subr.mxu0 0.0
    %606 = vmatpush1.msra.mxu0 0.0
    %607 = vmatprep.subr.mxu0 0.0
    %608 = vmatpush1.msra.mxu0 0.0
    %609 = vmatprep.subr.mxu0 0.0
    %610 = vmatpush1.msra.mxu0 0.0
    %611 = vmatprep.mubr.f32.mxu0 0.0
    %612 = vmatmul.mubr.f32.gmra.mrb[0].mxu0 %v542
    %v613 = vpop.f32.mrb[0].mxu0
    %v614 = vadd.f32 %v538, %v613
    %v615 = vpop.f32.mrb[0].mxu0
    %616 = vmatprep.mubr.f32.mxu0 0.0
    %617 = vmatmul.mubr.f32.gmra.mrb[0].mxu0 %v545
    %v618 = vpop.f32.mrb[0].mxu0
    %v619 = vadd.f32 %v538, %v618
    %v620 = vpop.f32.mrb[0].mxu0
    %621 = vdwg.mxu0
    %v622 = vmax.f32 %v614, 0.0
    %v623 = vmax.f32 %v619, 0.0
    %624 = vset.pattern.permute.xlu0 112
    %625 = vperm.xlu0 %624, %v23
    %v626 = vpop.permute.xlu0 %625
    %v628 = vlaneseq
    %v629 = vshrl.u32 %v628, 7
    %v630 = vsub.s32 0, %v629
    %v631 = vrot.slane %v626, %v630
    %632 = vrot.lane.b32.xlu0 %v30, 32
    %v633 = vpop.permute.xlu0 %632
    %v634 = vsel %vm32, %v633, 0
    %v637 = vsel %vm32, %v622, 0
    %v640 = vsel %vm32, %v623, 0
    %642 = vmatprep.subr.mxu0 0.0
    %643 = vmatpush1.xpose.msra.mxu0 %v637
    %644 = vmatprep.subr.mxu0 0.0
    %645 = vmatpush1.xpose.msra.mxu0 %v640
    %646 = vmatprep.subr.mxu0 0.0
    %647 = vmatpush1.xpose.msra.mxu0 0.0
    %648 = vmatprep.subr.mxu0 0.0
    %649 = vmatpush1.xpose.msra.mxu0 0.0
    %650 = vmatprep.subr.mxu0 0.0
    %651 = vmatpush1.xpose.msra.mxu0 0.0
    %652 = vmatprep.subr.mxu0 0.0
    %653 = vmatpush1.xpose.msra.mxu0 0.0
    %654 = vmatprep.subr.mxu0 0.0
    %655 = vmatpush1.xpose.msra.mxu0 0.0
    %656 = vmatprep.subr.mxu0 0.0
    %657 = vmatpush1.xpose.msra.mxu0 0.0
    %658 = vmatprep.subr.mxu0 0.0
    %659 = vmatpush1.xpose.msra.mxu0 0.0
    %660 = vmatprep.subr.mxu0 0.0
    %661 = vmatpush1.xpose.msra.mxu0 0.0
    %662 = vmatprep.subr.mxu0 0.0
    %663 = vmatpush1.xpose.msra.mxu0 0.0
    %664 = vmatprep.subr.mxu0 0.0
    %665 = vmatpush1.xpose.msra.mxu0 0.0
    %666 = vmatprep.subr.mxu0 0.0
    %667 = vmatpush1.xpose.msra.mxu0 0.0
    %668 = vmatprep.subr.mxu0 0.0
    %669 = vmatpush1.xpose.msra.mxu0 0.0
    %670 = vmatprep.subr.mxu0 0.0
    %671 = vmatpush1.xpose.msra.mxu0 0.0
    %672 = vmatprep.subr.mxu0 0.0
    %673 = vmatpush1.xpose.msra.mxu0 0.0
    %674 = vmatprep.subr.mxu0 0.0
    %675 = vmatpush1.xpose.msra.mxu0 0.0
    %676 = vmatprep.subr.mxu0 0.0
    %677 = vmatpush1.xpose.msra.mxu0 0.0
    %678 = vmatprep.subr.mxu0 0.0
    %679 = vmatpush1.xpose.msra.mxu0 0.0
    %680 = vmatprep.subr.mxu0 0.0
    %681 = vmatpush1.xpose.msra.mxu0 0.0
    %682 = vmatprep.subr.mxu0 0.0
    %683 = vmatpush1.xpose.msra.mxu0 0.0
    %684 = vmatprep.subr.mxu0 0.0
    %685 = vmatpush1.xpose.msra.mxu0 0.0
    %686 = vmatprep.subr.mxu0 0.0
    %687 = vmatpush1.xpose.msra.mxu0 0.0
    %688 = vmatprep.subr.mxu0 0.0
    %689 = vmatpush1.xpose.msra.mxu0 0.0
    %690 = vmatprep.subr.mxu0 0.0
    %691 = vmatpush1.xpose.msra.mxu0 0.0
    %692 = vmatprep.subr.mxu0 0.0
    %693 = vmatpush1.xpose.msra.mxu0 0.0
    %694 = vmatprep.subr.mxu0 0.0
    %695 = vmatpush1.xpose.msra.mxu0 0.0
    %696 = vmatprep.subr.mxu0 0.0
    %697 = vmatpush1.xpose.msra.mxu0 0.0
    %698 = vmatprep.subr.mxu0 0.0
    %699 = vmatpush1.xpose.msra.mxu0 0.0
    %700 = vmatprep.subr.mxu0 0.0
    %701 = vmatpush1.xpose.msra.mxu0 0.0
    %702 = vmatprep.subr.mxu0 0.0
    %703 = vmatpush1.xpose.msra.mxu0 0.0
    %704 = vmatprep.subr.mxu0 0.0
    %705 = vmatpush1.xpose.msra.mxu0 0.0
    %706 = vmatprep.mubr.f32.mxu0 0.0
    %707 = vmatmul.mubr.f32.gmra.mrb[0].mxu0 %v634
    %v708 = vpop.f32.mrb[0].mxu0
    %v709 = vadd.f32 %v631, %v708
    %v710 = vpop.f32.mrb[0].mxu0
    %711 = vdwg.mxu0
    %v712 = vxor.u32 %v709, 2147483648
    %v713 = vmul.f32 %v712, 1.442695
    %v714 = vpow.pop %v713
    %v715 = vadd.f32 %v714, 1.0
    %v716 = vrcp.pop %v715
    %v717 = vmul.f32 1.0, %v716
    %vm718 = vcmask 122880
    %719 = vst.msk [vmem:[#allocation2] sm:$0x1] %vm718, %v717
    // Predicated region
    $region22: #{tpu_custom_call.1} parent=1 // pred_check
      _
    $region23: #{tpu_custom_call.1} parent=1 // pred_check_branch
      %721 = sbr.rel (0) target = $region25
    $region24: #{tpu_custom_call.1} parent=1 // pred_region
      %s723 = ssub.s32 16, 16
      %724 = vsyncadd [#allocation3], %s723
      %s726 = sshll.u32 [#allocation2], 4
      %s727 = int_to_ptr.vmem [resolvable:$true] %s726
      %729 = dma.vmem_to_hbm [thread:$0]  %s727, 16, %s5, [#allocation3]
    $region25: #{tpu_custom_call.1} parent=1 // pred_fallthru
      _
    // Predicated region
    $region26: #{tpu_custom_call.1} parent=1 // pred_check
      _
    $region27: #{tpu_custom_call.1} parent=1 // pred_check_branch
      %731 = sbr.rel (0) target = $region29
    $region28: #{tpu_custom_call.1} parent=1 // pred_region
      %732 = dma.done [#allocation3], 16
    $region29: #{tpu_custom_call.1} parent=1 // pred_fallthru
      _
    %733 = vsyncpa [#allocation3], 1

</llo_original>
